<compile_context>
chip_gen: v7x
topology: tpu7x:2x2x1
jax: 0.10.0
libtpu: 0.0.40
codegen_flags: <defaults>
</compile_context>

<pallas_src>
import jax
import jax.numpy as jnp
from jax.experimental import pallas as pl
from jax.experimental.pallas import tpu as pltpu

_LANE = 128


def control_kernel(params_ref, x_ref, o_ref):
    # params (SMEM): [Beta, gamma, m, 1/m]   -- read once per grid step.
    beta = params_ref[0]
    gamma = params_ref[1]
    m = params_ref[2]
    inv_m = params_ref[3]

    # x_ref / o_ref are (4, tile_rows, 128); each row slice is a dense slab.
    S = x_ref[0]
    I = x_ref[1]
    R = x_ref[2]
    Vs = x_ref[3]

    N = S + I + R
    inv_N = pl.reciprocal(N, approx=True)          # EUP, frees VALU/divide

    one_plus_Vs = 1.0 + Vs
    # q = m*I*(1+Vs);  original c = 1 - q, so  (c >= 0) <=> (q <= 1).
    q = (m * I) * one_plus_Vs
    # Simplified positive quadratic root (assumes m > 0, see module docstring).
    root0 = (jnp.sqrt(q) - 1.0) * inv_m
    c_opt = jnp.where(q <= 1.0, root0, jnp.zeros_like(root0))

    # sigma(c) = 1 / (m*c + 1)
    sigma_c = pl.reciprocal(m * c_opt + 1.0, approx=True)

    flow = sigma_c * beta * inv_N * S * I          # sigma * (Beta/N) * S * I
    gI = gamma * I

    # Direct per-row stores (no concatenate / sublane shuffles).
    # torch.stack order: [dS, dI, dR, -dVs].
    o_ref[0] = -flow
    o_ref[1] = flow - gI
    o_ref[2] = gI
    o_ref[3] = -(one_plus_Vs * sigma_c * I + c_opt)


def _pick_tile_rows(rows, target):
    """Largest multiple-of-8 divisor of `rows` not exceeding `target`;
    falls back to the full extent (always legal as a block dim)."""
    if rows % 8 == 0:
        cand = min(target, rows)
        cand -= cand % 8
        while cand >= 8:
            if rows % cand == 0:
                return cand
            cand -= 8
    return rows


def control_model_forward(theta, m, t, X, *, tile_rows=512):
    """theta: (6,) = (B_0, g_0, m, S_0, I_0, V_0); m: scalar; X: (4, B) float32.

    Returns dX of shape (4, B) with rows [dS, dI, dR, -dVs].
    """
    del t  # time is unused in the reference forward pass
    B = X.shape[1]
    assert X.shape[0] == 4 and B % _LANE == 0, "batch must be a multiple of 128"
    rows = B // _LANE
    x3 = X.reshape(4, rows, _LANE)

    tr = _pick_tile_rows(rows, tile_rows)
    grid = (rows // tr,)

    m_f32 = jnp.asarray(m, jnp.float32)
    params = jnp.stack([
        theta[0].astype(jnp.float32),
        theta[1].astype(jnp.float32),
        m_f32,
        1.0 / m_f32,                      # hoisted scalar 1/m
    ])

    out3 = pl.pallas_call(
        control_kernel,
        out_shape=jax.ShapeDtypeStruct((4, rows, _LANE), jnp.float32),
        grid=grid,
        in_specs=[
            pl.BlockSpec(memory_space=pltpu.MemorySpace.SMEM),       # params
            pl.BlockSpec((4, tr, _LANE), lambda i: (0, i, 0)),       # X tile
        ],
        out_specs=pl.BlockSpec((4, tr, _LANE), lambda i: (0, i, 0)),
        compiler_params=pltpu.CompilerParams(
            dimension_semantics=("parallel",)),                      # megacore on v7x
    )(params, x3)
    return out3.reshape(4, B)


def _reference(theta, m, X):
    """Plain-JAX port of control_model.forward (original formulas) for checking."""
    beta, gamma = theta[0], theta[1]
    S, I, R, Vs = X[0], X[1], X[2], X[3]
    N = S + I + R
    a, b, c = m * m, 2.0 * m, 1.0 - m * I * (1.0 + Vs)
    root0 = (-b + jnp.sqrt(b * b - 4.0 * a * c)) / (2.0 * a)
    c_opt = jnp.where(c >= 0.0, root0, 0.0)
    sig = 1.0 / (m * c_opt + 1.0)
    flow = sig * (beta / N) * S * I
    dS = -flow
    dI = flow - gamma * I
    dR = gamma * I
    dVs = (1.0 + Vs) * sig * I + c_opt
    return jnp.stack([dS, dI, dR, -dVs])


if __name__ == "__main__":
    key = jax.random.PRNGKey(0)
    B = 4096  # 32 rows of 128 lanes (small smoke-test size)

    # theta = (B_0, g_0, m, S_0, I_0, V_0); m passed separately (m > 0).
    theta = jnp.array([0.3, 0.1, 2.0, 0.99, 0.01, 0.0], dtype=jnp.float32)
    m = jnp.float32(2.0)

    # Positive state values so N > 0 and the quadratic has real roots.
    X = jax.random.uniform(key, (4, B), dtype=jnp.float32, minval=0.05, maxval=1.0)
    t = jnp.float32(0.0)

    expected = _reference(theta, m, X)

    # Tolerance is relaxed vs. exact f32 math because pl.reciprocal(approx=True)
    # (EUP) carries a small relative error that compounds through sigma * 1/N.
    rtol = atol = 2e-3

    # (1) default large-tile path: whole (small) array resident, grid=(1,)
    dX = jax.block_until_ready(control_model_forward(theta, m, t, X))
    assert dX.shape == (4, B) and dX.dtype == jnp.float32
    assert bool(jnp.allclose(dX, expected, rtol=rtol, atol=atol))

    # (2) multi-step grid path (exercises pipelining / parallel grid axis)
    dX2 = jax.block_until_ready(control_model_forward(theta, m, t, X, tile_rows=8))
    assert bool(jnp.allclose(dX2, expected, rtol=rtol, atol=atol))

    print("KERNEL_OK")
</pallas_src>

<mosaic_0001>
module attributes {stable_mosaic.version = 11 : i64} {
  func.func @control_kernel(%arg0: i32, %arg1: memref<4xf32, #tpu.memory_space<smem>>, %arg2: memref<4x32x128xf32, #tpu.memory_space<vmem>>, %arg3: memref<4x32x128xf32, #tpu.memory_space<vmem>>) attributes {dimension_semantics = [#tpu.dimension_semantics<parallel>], iteration_bounds = array<i64: 1>, scalar_prefetch = 0 : i64, scratch_operands = 0 : i64, tpu.core_type = #tpu.core_type<tc>, window_params = [{transform_indices = @transform_0, window_bounds = array<i64: 4>}, {transform_indices = @transform_1, window_bounds = array<i64: 4, 32, 128>}, {transform_indices = @transform_2, window_bounds = array<i64: 4, 32, 128>}]} {
    %c0 = arith.constant 0 : index
    %0 = memref.load %arg1[%c0] : memref<4xf32, #tpu.memory_space<smem>>
    %c1 = arith.constant 1 : index
    %1 = memref.load %arg1[%c1] : memref<4xf32, #tpu.memory_space<smem>>
    %c2 = arith.constant 2 : index
    %2 = memref.load %arg1[%c2] : memref<4xf32, #tpu.memory_space<smem>>
    %c3 = arith.constant 3 : index
    %3 = memref.load %arg1[%c3] : memref<4xf32, #tpu.memory_space<smem>>
    %c0_0 = arith.constant 0 : index
    %c0_1 = arith.constant 0 : index
    %c0_2 = arith.constant 0 : index
    %4 = vector.load %arg2[%c0_0, %c0_1, %c0_2] : memref<4x32x128xf32, #tpu.memory_space<vmem>>, vector<1x32x128xf32>
    %5 = vector.shape_cast %4 : vector<1x32x128xf32> to vector<32x128xf32>
    %c1_3 = arith.constant 1 : index
    %c0_4 = arith.constant 0 : index
    %c0_5 = arith.constant 0 : index
    %6 = vector.load %arg2[%c1_3, %c0_4, %c0_5] : memref<4x32x128xf32, #tpu.memory_space<vmem>>, vector<1x32x128xf32>
    %7 = vector.shape_cast %6 : vector<1x32x128xf32> to vector<32x128xf32>
    %c2_6 = arith.constant 2 : index
    %c0_7 = arith.constant 0 : index
    %c0_8 = arith.constant 0 : index
    %8 = vector.load %arg2[%c2_6, %c0_7, %c0_8] : memref<4x32x128xf32, #tpu.memory_space<vmem>>, vector<1x32x128xf32>
    %9 = vector.shape_cast %8 : vector<1x32x128xf32> to vector<32x128xf32>
    %c3_9 = arith.constant 3 : index
    %c0_10 = arith.constant 0 : index
    %c0_11 = arith.constant 0 : index
    %10 = vector.load %arg2[%c3_9, %c0_10, %c0_11] : memref<4x32x128xf32, #tpu.memory_space<vmem>>, vector<1x32x128xf32>
    %11 = vector.shape_cast %10 : vector<1x32x128xf32> to vector<32x128xf32>
    %12 = arith.addf %5, %7 : vector<32x128xf32>
    %13 = arith.addf %12, %9 : vector<32x128xf32>
    %14 = tpu.reciprocal %13 {approx = true} : vector<32x128xf32> -> vector<32x128xf32>
    %cst = arith.constant 1.000000e+00 : f32
    %15 = vector.broadcast %cst : f32 to vector<32x128xf32>
    %16 = arith.addf %15, %11 : vector<32x128xf32>
    %17 = vector.broadcast %2 : f32 to vector<32x128xf32>
    %18 = arith.mulf %17, %7 : vector<32x128xf32>
    %19 = arith.mulf %18, %16 : vector<32x128xf32>
    %20 = math.sqrt %19 : vector<32x128xf32>
    %cst_12 = arith.constant 1.000000e+00 : f32
    %21 = vector.broadcast %cst_12 : f32 to vector<32x128xf32>
    %22 = arith.subf %20, %21 : vector<32x128xf32>
    %23 = vector.broadcast %3 : f32 to vector<32x128xf32>
    %24 = arith.mulf %22, %23 : vector<32x128xf32>
    %cst_13 = arith.constant 1.000000e+00 : f32
    %25 = vector.broadcast %cst_13 : f32 to vector<32x128xf32>
    %26 = arith.cmpf ole, %19, %25 : vector<32x128xf32>
    %cst_14 = arith.constant 0.000000e+00 : f32
    %27 = vector.broadcast %cst_14 : f32 to vector<32x128xf32>
    %28 = arith.select %26, %24, %27 : vector<32x128xi1>, vector<32x128xf32>
    %29 = vector.broadcast %2 : f32 to vector<32x128xf32>
    %30 = arith.mulf %29, %28 : vector<32x128xf32>
    %cst_15 = arith.constant 1.000000e+00 : f32
    %31 = vector.broadcast %cst_15 : f32 to vector<32x128xf32>
    %32 = arith.addf %30, %31 : vector<32x128xf32>
    %33 = tpu.reciprocal %32 {approx = true} : vector<32x128xf32> -> vector<32x128xf32>
    %34 = vector.broadcast %0 : f32 to vector<32x128xf32>
    %35 = arith.mulf %33, %34 : vector<32x128xf32>
    %36 = arith.mulf %35, %14 : vector<32x128xf32>
    %37 = arith.mulf %36, %5 : vector<32x128xf32>
    %38 = arith.mulf %37, %7 : vector<32x128xf32>
    %39 = vector.broadcast %1 : f32 to vector<32x128xf32>
    %40 = arith.mulf %39, %7 : vector<32x128xf32>
    %cst_16 = arith.constant 0.000000e+00 : f32
    %41 = vector.broadcast %cst_16 : f32 to vector<32x128xf32>
    %42 = arith.subf %41, %38 : vector<32x128xf32>
    %c0_17 = arith.constant 0 : index
    %c0_18 = arith.constant 0 : index
    %c0_19 = arith.constant 0 : index
    %43 = vector.load %arg3[%c0_17, %c0_18, %c0_19] : memref<4x32x128xf32, #tpu.memory_space<vmem>>, vector<1x32x128xf32>
    %44 = vector.shape_cast %43 : vector<1x32x128xf32> to vector<32x128xf32>
    %45 = vector.shape_cast %42 : vector<32x128xf32> to vector<1x32x128xf32>
    tpu.vector_store %arg3[%c0_17, %c0_18, %c0_19], %45 {strides = array<i32>} : memref<4x32x128xf32, #tpu.memory_space<vmem>>, vector<1x32x128xf32>,
    %46 = arith.subf %38, %40 : vector<32x128xf32>
    %c1_20 = arith.constant 1 : index
    %c0_21 = arith.constant 0 : index
    %c0_22 = arith.constant 0 : index
    %47 = vector.load %arg3[%c1_20, %c0_21, %c0_22] : memref<4x32x128xf32, #tpu.memory_space<vmem>>, vector<1x32x128xf32>
    %48 = vector.shape_cast %47 : vector<1x32x128xf32> to vector<32x128xf32>
    %49 = vector.shape_cast %46 : vector<32x128xf32> to vector<1x32x128xf32>
    tpu.vector_store %arg3[%c1_20, %c0_21, %c0_22], %49 {strides = array<i32>} : memref<4x32x128xf32, #tpu.memory_space<vmem>>, vector<1x32x128xf32>,
    %c2_23 = arith.constant 2 : index
    %c0_24 = arith.constant 0 : index
    %c0_25 = arith.constant 0 : index
    %50 = vector.load %arg3[%c2_23, %c0_24, %c0_25] : memref<4x32x128xf32, #tpu.memory_space<vmem>>, vector<1x32x128xf32>
    %51 = vector.shape_cast %50 : vector<1x32x128xf32> to vector<32x128xf32>
    %52 = vector.shape_cast %40 : vector<32x128xf32> to vector<1x32x128xf32>
    tpu.vector_store %arg3[%c2_23, %c0_24, %c0_25], %52 {strides = array<i32>} : memref<4x32x128xf32, #tpu.memory_space<vmem>>, vector<1x32x128xf32>,
    %53 = arith.mulf %16, %33 : vector<32x128xf32>
    %54 = arith.mulf %53, %7 : vector<32x128xf32>
    %55 = arith.addf %54, %28 : vector<32x128xf32>
    %cst_26 = arith.constant 0.000000e+00 : f32
    %56 = vector.broadcast %cst_26 : f32 to vector<32x128xf32>
    %57 = arith.subf %56, %55 : vector<32x128xf32>
    %c3_27 = arith.constant 3 : index
    %c0_28 = arith.constant 0 : index
    %c0_29 = arith.constant 0 : index
    %58 = vector.load %arg3[%c3_27, %c0_28, %c0_29] : memref<4x32x128xf32, #tpu.memory_space<vmem>>, vector<1x32x128xf32>
    %59 = vector.shape_cast %58 : vector<1x32x128xf32> to vector<32x128xf32>
    %60 = vector.shape_cast %57 : vector<32x128xf32> to vector<1x32x128xf32>
    tpu.vector_store %arg3[%c3_27, %c0_28, %c0_29], %60 {strides = array<i32>} : memref<4x32x128xf32, #tpu.memory_space<vmem>>, vector<1x32x128xf32>,
    return
  }
  func.func @transform_0(%arg0: i32) -> i32 {
    %c0_i32 = arith.constant 0 : i32
    %c0_i32_0 = arith.constant 0 : i32
    return %c0_i32 : i32
  }
  func.func @transform_1(%arg0: i32) -> (i32, i32, i32) {
    %c0_i32 = arith.constant 0 : i32
    %c0_i32_0 = arith.constant 0 : i32
    %c0_i32_1 = arith.constant 0 : i32
    return %c0_i32, %arg0, %c0_i32_0 : i32, i32, i32
  }
  func.func @transform_2(%arg0: i32) -> (i32, i32, i32) {
    %c0_i32 = arith.constant 0 : i32
    %c0_i32_0 = arith.constant 0 : i32
    %c0_i32_1 = arith.constant 0 : i32
    return %c0_i32, %arg0, %c0_i32_0 : i32, i32, i32
  }
}

</mosaic_0001>

<llo_original>
// kernel: tpu_custom_call.1
$region0: #{tpu_custom_call.1}
  #allocation0 [shape = 'u32[]', space=smem, size = 0x4, offset = 0x4, fixed_abs, tag = 'smem constant byte address 0x4 - core index']
  #allocation1 [shape = 'u32[144,128]{1,0:T(1,128)}', space=vmem, size = 0x12000, scoped, tag = 'internal scratch']
  %s0 = inlined_call_operand.hbm [shape: f32[4], index: 0, kind: input, shape index: {}]
  %s1 = inlined_call_operand.hbm [shape: f32[4,32,128], index: 1, kind: input, shape index: {}]
  %s2 = inlined_call_operand.hbm [shape: f32[4,32,128], index: 2, kind: output, shape index: {}]
  %s3 = sld [smem:[#allocation0]]
  $region26: #{tpu_custom_call.1} parent=0
    _
  %s5 = ssub.s32 1, %s3
  %s6 = scalar_select 0, %s5, %s3
  $region1: #{tpu_custom_call.1} parent=0
    #allocation2 [shape = 'u8[512]{0}', space=smem, size = 0x200, scoped, tag = 'input window, operand 0, single buffered']
    #allocation3 [shape = 's32[1]{0}', space=sflag, size = 0x4, scoped, tag = 'scoped memory for tpu_custom_call.1']
    #allocation4 [shape = 's32[1]{0}', space=sflag, size = 0x4, scoped, tag = 'scoped memory for tpu_custom_call.1']
    #allocation5 [shape = 's32[1]{0}', space=sflag, size = 0x4, scoped, tag = 'scoped memory for tpu_custom_call.1']
    #allocation6 [shape = 'u8[65536]{0}', space=vmem, size = 0x10000, scoped, tag = 'input window, operand 1, single buffered']
    #allocation7 [shape = 'u8[65536]{0}', space=vmem, size = 0x10000, scoped, tag = 'output window, operand 0, single buffered']
    %7 = vsyncpa [#allocation5], 0
    %8 = vsyncpa [#allocation3], 0
    %9 = vsyncpa [#allocation4], 0
    // Predicated region
    $region2: #{tpu_custom_call.1} parent=1 // pred_check
      _
    $region3: #{tpu_custom_call.1} parent=1 // pred_check_branch
      %11 = sbr.rel (0) target = $region5
    $region4: #{tpu_custom_call.1} parent=1 // pred_region
      %s13 = ssub.s32 16, 16
      %14 = vsyncadd [#allocation5], %s13
      %17 = dma.hbm_to_smem %s0, 16, [#allocation2], [#allocation5]
    $region5: #{tpu_custom_call.1} parent=1 // pred_fallthru
      _
    // Predicated region
    $region6: #{tpu_custom_call.1} parent=1 // pred_check
      _
    $region7: #{tpu_custom_call.1} parent=1 // pred_check_branch
      %19 = sbr.rel (0) target = $region9
    $region8: #{tpu_custom_call.1} parent=1 // pred_region
      %s21 = ssub.s32 2048, 2048
      %22 = vsyncadd [#allocation3], %s21
      %s23 = sshll.u32 [#allocation6], 4
      %s24 = int_to_ptr.vmem [resolvable:$true] %s23
      %29 = dma.hbm_to_vmem [thread:$0]  %s1, 2048, %s24, [#allocation3], 128, 128, 8
    $region9: #{tpu_custom_call.1} parent=1 // pred_fallthru
      _
    // Predicated region
    $region10: #{tpu_custom_call.1} parent=1 // pred_check
      _
    $region11: #{tpu_custom_call.1} parent=1 // pred_check_branch
      %31 = sbr.rel (0) target = $region13
    $region12: #{tpu_custom_call.1} parent=1 // pred_region
      %32 = dma.done [#allocation5], 16
    $region13: #{tpu_custom_call.1} parent=1 // pred_fallthru
      _
    // Predicated region
    $region14: #{tpu_custom_call.1} parent=1 // pred_check
      _
    $region15: #{tpu_custom_call.1} parent=1 // pred_check_branch
      %34 = sbr.rel (0) target = $region17
    $region16: #{tpu_custom_call.1} parent=1 // pred_region
      %35 = dma.done [#allocation3], 2048
    $region17: #{tpu_custom_call.1} parent=1 // pred_fallthru
      _
    %36 = sfence
    %s37 = sld [smem:[#allocation2]]
    %s38 = sld [smem:[#allocation2 + $0x1]]
    %s39 = sld [smem:[#allocation2 + $0x2]]
    %s40 = sld [smem:[#allocation2 + $0x3]]
    %v41 = vld [vmem:[#allocation6] sm:$0xff]
    %v42 = vld [vmem:[#allocation6 + $0x8] sm:$0xff]
    %v43 = vld [vmem:[#allocation6 + $0x10] sm:$0xff]
    %v44 = vld [vmem:[#allocation6 + $0x18] sm:$0xff]
    %s45 = scalar_lea.vmem [#allocation6], 32
    %v46 = vld [vmem:[%s45] sm:$0xff]
    %v47 = vld [vmem:[%s45 + $0x8] sm:$0xff]
    %v48 = vld [vmem:[%s45 + $0x10] sm:$0xff]
    %v49 = vld [vmem:[%s45 + $0x18] sm:$0xff]
    %s50 = scalar_lea.vmem [#allocation6], 64
    %v51 = vld [vmem:[%s50] sm:$0xff]
    %v52 = vld [vmem:[%s50 + $0x8] sm:$0xff]
    %v53 = vld [vmem:[%s50 + $0x10] sm:$0xff]
    %v54 = vld [vmem:[%s50 + $0x18] sm:$0xff]
    %s55 = scalar_lea.vmem [#allocation6], 96
    %v56 = vld [vmem:[%s55] sm:$0xff]
    %v57 = vld [vmem:[%s55 + $0x8] sm:$0xff]
    %v58 = vld [vmem:[%s55 + $0x10] sm:$0xff]
    %v59 = vld [vmem:[%s55 + $0x18] sm:$0xff]
    %v60 = vadd.f32 %v41, %v46
    %v61 = vadd.f32 %v42, %v47
    %v62 = vadd.f32 %v43, %v48
    %v63 = vadd.f32 %v44, %v49
    %v64 = vadd.f32 %v60, %v51
    %v65 = vadd.f32 %v61, %v52
    %v66 = vadd.f32 %v62, %v53
    %v67 = vadd.f32 %v63, %v54
    %v68 = vrcp.pop %v64
    %v69 = vrcp.pop %v65
    %v70 = vrcp.pop %v66
    %v71 = vrcp.pop %v67
    %v72 = vadd.f32 %v56, 1.0
    %v73 = vadd.f32 %v57, 1.0
    %v74 = vadd.f32 %v58, 1.0
    %v75 = vadd.f32 %v59, 1.0
    %v76 = vstv %s39
    %v77 = vmul.f32 %v76, %v46
    %v78 = vmul.f32 %v76, %v47
    %v79 = vmul.f32 %v76, %v48
    %v80 = vmul.f32 %v76, %v49
    %v81 = vmul.f32 %v77, %v72
    %v82 = vmul.f32 %v78, %v73
    %v83 = vmul.f32 %v79, %v74
    %v84 = vmul.f32 %v80, %v75
    %v85 = vrsqrt.pop %v81
    %v86 = vmul.f32 %v81, %v85
    %vm87 = vcmp.eq.f32.partialorder %v81, inf
    %v88 = vsel %vm87, %v81, %v86
    %vm89 = vcmp.eq.f32.partialorder %v81, 0.0
    %v90 = vand.u32 %v81, 2147483648
    %v91 = vsel %vm89, %v90, %v88
    %v92 = vrsqrt.pop %v82
    %v93 = vmul.f32 %v82, %v92
    %vm94 = vcmp.eq.f32.partialorder %v82, inf
    %v95 = vsel %vm94, %v82, %v93
    %vm96 = vcmp.eq.f32.partialorder %v82, 0.0
    %v97 = vand.u32 %v82, 2147483648
    %v98 = vsel %vm96, %v97, %v95
    %v99 = vrsqrt.pop %v83
    %v100 = vmul.f32 %v83, %v99
    %vm101 = vcmp.eq.f32.partialorder %v83, inf
    %v102 = vsel %vm101, %v83, %v100
    %vm103 = vcmp.eq.f32.partialorder %v83, 0.0
    %v104 = vand.u32 %v83, 2147483648
    %v105 = vsel %vm103, %v104, %v102
    %v106 = vrsqrt.pop %v84
    %v107 = vmul.f32 %v84, %v106
    %vm108 = vcmp.eq.f32.partialorder %v84, inf
    %v109 = vsel %vm108, %v84, %v107
    %vm110 = vcmp.eq.f32.partialorder %v84, 0.0
    %v111 = vand.u32 %v84, 2147483648
    %v112 = vsel %vm110, %v111, %v109
    %v113 = vsub.f32 %v91, 1.0
    %v114 = vsub.f32 %v98, 1.0
    %v115 = vsub.f32 %v105, 1.0
    %v116 = vsub.f32 %v112, 1.0
    %v117 = vstv %s40
    %v118 = vmul.f32 %v113, %v117
    %v119 = vmul.f32 %v114, %v117
    %v120 = vmul.f32 %v115, %v117
    %v121 = vmul.f32 %v116, %v117
    %vm122 = vcmp.le.f32.partialorder %v81, 1.0
    %vm123 = vcmp.le.f32.partialorder %v82, 1.0
    %vm124 = vcmp.le.f32.partialorder %v83, 1.0
    %vm125 = vcmp.le.f32.partialorder %v84, 1.0
    %v126 = vsel %vm122, %v118, 0.0
    %v127 = vsel %vm123, %v119, 0.0
    %v128 = vsel %vm124, %v120, 0.0
    %v129 = vsel %vm125, %v121, 0.0
    %v130 = vmul.f32 %v76, %v126
    %v131 = vmul.f32 %v76, %v127
    %v132 = vmul.f32 %v76, %v128
    %v133 = vmul.f32 %v76, %v129
    %v134 = vadd.f32 %v130, 1.0
    %v135 = vadd.f32 %v131, 1.0
    %v136 = vadd.f32 %v132, 1.0
    %v137 = vadd.f32 %v133, 1.0
    %v138 = vrcp.pop %v134
    %v139 = vrcp.pop %v135
    %v140 = vrcp.pop %v136
    %v141 = vrcp.pop %v137
    %v142 = vstv %s37
    %v143 = vmul.f32 %v138, %v142
    %v144 = vmul.f32 %v139, %v142
    %v145 = vmul.f32 %v140, %v142
    %v146 = vmul.f32 %v141, %v142
    %v147 = vmul.f32 %v143, %v68
    %v148 = vmul.f32 %v144, %v69
    %v149 = vmul.f32 %v145, %v70
    %v150 = vmul.f32 %v146, %v71
    %v151 = vmul.f32 %v147, %v41
    %v152 = vmul.f32 %v148, %v42
    %v153 = vmul.f32 %v149, %v43
    %v154 = vmul.f32 %v150, %v44
    %v155 = vmul.f32 %v151, %v46
    %v156 = vmul.f32 %v152, %v47
    %v157 = vmul.f32 %v153, %v48
    %v158 = vmul.f32 %v154, %v49
    %v159 = vstv %s38
    %v160 = vmul.f32 %v159, %v46
    %v161 = vmul.f32 %v159, %v47
    %v162 = vmul.f32 %v159, %v48
    %v163 = vmul.f32 %v159, %v49
    %v164 = vsub.f32 0.0, %v155
    %v165 = vsub.f32 0.0, %v156
    %v166 = vsub.f32 0.0, %v157
    %v167 = vsub.f32 0.0, %v158
    %168 = vst [vmem:[#allocation7] sm:$0xff] %v164
    %169 = vst [vmem:[#allocation7 + $0x8] sm:$0xff] %v165
    %170 = vst [vmem:[#allocation7 + $0x10] sm:$0xff] %v166
    %171 = vst [vmem:[#allocation7 + $0x18] sm:$0xff] %v167
    %v172 = vsub.f32 %v155, %v160
    %v173 = vsub.f32 %v156, %v161
    %v174 = vsub.f32 %v157, %v162
    %v175 = vsub.f32 %v158, %v163
    %s176 = scalar_lea.vmem [#allocation7], 32
    %177 = vst [vmem:[%s176] sm:$0xff] %v172
    %178 = vst [vmem:[%s176 + $0x8] sm:$0xff] %v173
    %179 = vst [vmem:[%s176 + $0x10] sm:$0xff] %v174
    %180 = vst [vmem:[%s176 + $0x18] sm:$0xff] %v175
    %s181 = scalar_lea.vmem [#allocation7], 64
    %182 = vst [vmem:[%s181] sm:$0xff] %v160
    %183 = vst [vmem:[%s181 + $0x8] sm:$0xff] %v161
    %184 = vst [vmem:[%s181 + $0x10] sm:$0xff] %v162
    %185 = vst [vmem:[%s181 + $0x18] sm:$0xff] %v163
    %v186 = vmul.f32 %v72, %v138
    %v187 = vmul.f32 %v73, %v139
    %v188 = vmul.f32 %v74, %v140
    %v189 = vmul.f32 %v75, %v141
    %v190 = vmul.f32 %v186, %v46
    %v191 = vmul.f32 %v187, %v47
    %v192 = vmul.f32 %v188, %v48
    %v193 = vmul.f32 %v189, %v49
    %v194 = vadd.f32 %v190, %v126
    %v195 = vadd.f32 %v191, %v127
    %v196 = vadd.f32 %v192, %v128
    %v197 = vadd.f32 %v193, %v129
    %v198 = vsub.f32 0.0, %v194
    %v199 = vsub.f32 0.0, %v195
    %v200 = vsub.f32 0.0, %v196
    %v201 = vsub.f32 0.0, %v197
    %s202 = scalar_lea.vmem [#allocation7], 96
    %203 = vst [vmem:[%s202] sm:$0xff] %v198
    %204 = vst [vmem:[%s202 + $0x8] sm:$0xff] %v199
    %205 = vst [vmem:[%s202 + $0x10] sm:$0xff] %v200
    %206 = vst [vmem:[%s202 + $0x18] sm:$0xff] %v201
    // Predicated region
    $region18: #{tpu_custom_call.1} parent=1 // pred_check
      _
    $region19: #{tpu_custom_call.1} parent=1 // pred_check_branch
      %208 = sbr.rel (0) target = $region21
    $region20: #{tpu_custom_call.1} parent=1 // pred_region
      %s210 = ssub.s32 2048, 2048
      %211 = vsyncadd [#allocation4], %s210
      %s212 = sshll.u32 [#allocation7], 4
      %s213 = int_to_ptr.vmem [resolvable:$true] %s212
      %218 = dma.vmem_to_hbm [thread:$0]  %s213, 2048, %s2, [#allocation4], 128, 128, 8
    $region21: #{tpu_custom_call.1} parent=1 // pred_fallthru
      _
    // Predicated region
    $region22: #{tpu_custom_call.1} parent=1 // pred_check
      _
    $region23: #{tpu_custom_call.1} parent=1 // pred_check_branch
      %220 = sbr.rel (0) target = $region25
    $region24: #{tpu_custom_call.1} parent=1 // pred_region
      %221 = dma.done [#allocation4], 2048
    $region25: #{tpu_custom_call.1} parent=1 // pred_fallthru
      _
    %222 = vsyncpa [#allocation3], 1
    %223 = vsyncpa [#allocation4], 1
    %224 = vsyncpa [#allocation5], 1

</llo_original>
